<compile_context>
chip_gen: v5e
topology: v5e:2x2
jax: 0.10.0
libtpu: 0.0.40
codegen_flags: <defaults>
</compile_context>

<pallas_src>
import numpy as np
import jax
import jax.numpy as jnp
from jax import lax
from jax.experimental import pallas as pl
from jax.experimental.pallas import tpu as pltpu

EPS = 1e-5  # PyTorch BatchNorm2d default


def conv_bn_relu_kernel(p_ref, w_ref, gamma_ref, beta_ref, o_ref):
    # --- Conv2d as matmul (MXU), lane-dense (C_out, M) output ----------------
    # bf16 inputs, single MXU pass, f32 accumulation.
    y = jnp.dot(w_ref[...], p_ref[...],
                preferred_element_type=jnp.float32)          # (C_out, M) f32

    # --- BatchNorm2d (training-mode forward), fused scale+shift --------------
    # Batch statistics over (N, H, W) == axis 1 (the M/lane axis), biased var.
    m = y.shape[1]
    inv_m = 1.0 / m
    s1 = jnp.sum(y, axis=1, keepdims=True)                   # (C_out, 1)
    s2 = jnp.sum(y * y, axis=1, keepdims=True)               # (C_out, 1)
    mean = s1 * inv_m
    var = jnp.maximum(s2 * inv_m - mean * mean, 0.0)         # clamp cancellation
    a = gamma_ref[...] * lax.rsqrt(var + EPS)                # (C_out, 1)
    b = beta_ref[...] - mean * a                             # (C_out, 1)

    # --- fused normalize + affine + ReLU (one FMA pass on the VPU) -----------
    o_ref[...] = jnp.maximum(y * a + b, 0.0)


def conv2d_with_bn(x, weight, gamma, beta, *, stride=1, padding=1):
    """x: (N, C_in, H, W) NCHW; weight: (C_out, C_in, kH, kW); returns NCHW."""
    N, Cin, H, W = x.shape
    Cout, _, KH, KW = weight.shape
    Ho = (H + 2 * padding - KH) // stride + 1
    Wo = (W + 2 * padding - KW) // stride + 1

    # Glue: im2col with K ordered (c_in, kh, kw)-major so it matches
    # weight.reshape(C_out, -1) directly, and M ordered (n, ho, wo).
    # Only one small 4-D transpose of the input; no 5-D shuffle.
    x_t = jnp.transpose(x, (1, 0, 2, 3))                      # (Cin, N, H, W)
    x_pad = jnp.pad(x_t, ((0, 0), (0, 0),
                          (padding, padding), (padding, padding)))
    patches = [
        x_pad[:, :, kh:kh + stride * Ho:stride, kw:kw + stride * Wo:stride]
        for kh in range(KH) for kw in range(KW)
    ]                                                         # each (Cin,N,Ho,Wo)
    P = jnp.stack(patches, axis=1)                            # (Cin, KH*KW, N, Ho, Wo)
    P = P.reshape(Cin * KH * KW, N * Ho * Wo).astype(jnp.bfloat16)   # (K, M)

    Wt = weight.reshape(Cout, Cin * KH * KW).astype(jnp.bfloat16)    # (C_out, K)
    gamma2 = gamma.reshape(Cout, 1).astype(jnp.float32)
    beta2 = beta.reshape(Cout, 1).astype(jnp.float32)

    # Tiny problem (M=512, K=36, C_out=8): one kernel invocation, no grid,
    # everything resident in VMEM so the BN reduction over M is single-pass.
    out_cm = pl.pallas_call(
        conv_bn_relu_kernel,
        out_shape=jax.ShapeDtypeStruct((Cout, N * Ho * Wo), jnp.float32),
        in_specs=[pl.BlockSpec(memory_space=pltpu.MemorySpace.VMEM)] * 4,
        out_specs=pl.BlockSpec(memory_space=pltpu.MemorySpace.VMEM),
    )(P, Wt, gamma2, beta2)

    out = out_cm.reshape(Cout, N, Ho, Wo)
    return jnp.transpose(out, (1, 0, 2, 3))                   # (N, C_out, Ho, Wo)


def reference(x, weight, gamma, beta, *, stride=1, padding=1):
    y = lax.conv_general_dilated(
        x.astype(jnp.float32), weight.astype(jnp.float32),
        (stride, stride), [(padding, padding), (padding, padding)],
        dimension_numbers=("NCHW", "OIHW", "NCHW"),
        precision=lax.Precision.HIGHEST,
    )
    mean = jnp.mean(y, axis=(0, 2, 3), keepdims=True)
    var = jnp.mean((y - mean) ** 2, axis=(0, 2, 3), keepdims=True)
    yhat = (y - mean) * lax.rsqrt(var + EPS)
    out = yhat * gamma.reshape(1, -1, 1, 1) + beta.reshape(1, -1, 1, 1)
    return jnp.maximum(out, 0.0)


if __name__ == "__main__":
    key = jax.random.PRNGKey(0)
    k_x, k_w, k_g, k_b = jax.random.split(key, 4)

    N, Cin, Cout, H, W = 2, 4, 8, 16, 16
    KH = KW = 3

    x = jax.random.normal(k_x, (N, Cin, H, W), dtype=jnp.float32)
    weight = jax.random.normal(k_w, (Cout, Cin, KH, KW), dtype=jnp.float32) * 0.1
    gamma = jax.random.uniform(k_g, (Cout,), dtype=jnp.float32,
                               minval=0.5, maxval=1.5)
    beta = jax.random.normal(k_b, (Cout,), dtype=jnp.float32) * 0.1

    out = conv2d_with_bn(x, weight, gamma, beta, stride=1, padding=1)
    out = jax.block_until_ready(out)

    ref = jax.block_until_ready(reference(x, weight, gamma, beta,
                                          stride=1, padding=1))
    assert out.shape == (N, Cout, H, W), out.shape
    # Kernel feeds bf16 inputs to the MXU (f32 accumulation): ~0.2-0.4% relative
    # input-quantization error vs the f32/HIGHEST reference, hence 2e-2 tols.
    np.testing.assert_allclose(np.asarray(out), np.asarray(ref),
                               rtol=2e-2, atol=2e-2)

    print("KERNEL_OK")
</pallas_src>

<mosaic_0001>
module attributes {stable_mosaic.version = 11 : i64} {
  func.func @conv_bn_relu_kernel(%arg0: memref<36x512xbf16, #tpu.memory_space<vmem>>, %arg1: memref<8x36xbf16, #tpu.memory_space<vmem>>, %arg2: memref<8x1xf32, #tpu.memory_space<vmem>>, %arg3: memref<8x1xf32, #tpu.memory_space<vmem>>, %arg4: memref<8x512xf32, #tpu.memory_space<vmem>>) attributes {dimension_semantics = [], scalar_prefetch = 0 : i64, scratch_operands = 0 : i64, tpu.core_type = #tpu.core_type<tc>} {
    %c0 = arith.constant 0 : index
    %c0_0 = arith.constant 0 : index
    %0 = vector.load %arg1[%c0, %c0_0] : memref<8x36xbf16, #tpu.memory_space<vmem>>, vector<8x36xbf16>
    %c0_1 = arith.constant 0 : index
    %c0_2 = arith.constant 0 : index
    %1 = vector.load %arg0[%c0_1, %c0_2] : memref<36x512xbf16, #tpu.memory_space<vmem>>, vector<36x512xbf16>
    %cst = arith.constant dense<0.000000e+00> : vector<8x512xf32>
    %2 = tpu.matmul %0, %1, %cst {dimension_numbers = #tpu.dot_dimension_numbers<[1], [0], [0], [1], [0, 0, 1, 1], [], []>} : vector<8x36xbf16>, vector<36x512xbf16>, vector<8x512xf32> -> vector<8x512xf32>
    %cst_3 = arith.constant dense<0.000000e+00> : vector<8xf32>
    %3 = vector.multi_reduction <add>, %2, %cst_3 [1] : vector<8x512xf32> to vector<8xf32>
    %4 = vector.shape_cast %3 : vector<8xf32> to vector<8x1xf32>
    %5 = arith.mulf %2, %2 : vector<8x512xf32>
    %cst_4 = arith.constant dense<0.000000e+00> : vector<8xf32>
    %6 = vector.multi_reduction <add>, %5, %cst_4 [1] : vector<8x512xf32> to vector<8xf32>
    %7 = vector.shape_cast %6 : vector<8xf32> to vector<8x1xf32>
    %cst_5 = arith.constant 0.001953125 : f32
    %8 = vector.broadcast %cst_5 : f32 to vector<8x1xf32>
    %9 = arith.mulf %4, %8 : vector<8x1xf32>
    %cst_6 = arith.constant 0.001953125 : f32
    %10 = vector.broadcast %cst_6 : f32 to vector<8x1xf32>
    %11 = arith.mulf %7, %10 : vector<8x1xf32>
    %12 = arith.mulf %9, %9 : vector<8x1xf32>
    %13 = arith.subf %11, %12 : vector<8x1xf32>
    %cst_7 = arith.constant 0.000000e+00 : f32
    %14 = vector.broadcast %cst_7 : f32 to vector<8x1xf32>
    %15 = arith.maximumf %13, %14 : vector<8x1xf32>
    %c0_8 = arith.constant 0 : index
    %c0_9 = arith.constant 0 : index
    %16 = vector.load %arg2[%c0_8, %c0_9] : memref<8x1xf32, #tpu.memory_space<vmem>>, vector<8x1xf32>
    %cst_10 = arith.constant 9.99999974E-6 : f32
    %17 = vector.broadcast %cst_10 : f32 to vector<8x1xf32>
    %18 = arith.addf %15, %17 : vector<8x1xf32>
    %19 = math.rsqrt %18 : vector<8x1xf32>
    %20 = arith.mulf %16, %19 : vector<8x1xf32>
    %c0_11 = arith.constant 0 : index
    %c0_12 = arith.constant 0 : index
    %21 = vector.load %arg3[%c0_11, %c0_12] : memref<8x1xf32, #tpu.memory_space<vmem>>, vector<8x1xf32>
    %22 = arith.mulf %9, %20 : vector<8x1xf32>
    %23 = arith.subf %21, %22 : vector<8x1xf32>
    %24 = vector.broadcast %20 : vector<8x1xf32> to vector<8x512xf32>
    %25 = arith.mulf %2, %24 : vector<8x512xf32>
    %26 = vector.broadcast %23 : vector<8x1xf32> to vector<8x512xf32>
    %27 = arith.addf %25, %26 : vector<8x512xf32>
    %cst_13 = arith.constant 0.000000e+00 : f32
    %28 = vector.broadcast %cst_13 : f32 to vector<8x512xf32>
    %29 = arith.maximumf %27, %28 : vector<8x512xf32>
    %c0_14 = arith.constant 0 : index
    %c0_15 = arith.constant 0 : index
    %30 = vector.load %arg4[%c0_14, %c0_15] : memref<8x512xf32, #tpu.memory_space<vmem>>, vector<8x512xf32>
    tpu.vector_store %arg4[%c0_14, %c0_15], %29 {strides = array<i32>} : memref<8x512xf32, #tpu.memory_space<vmem>>, vector<8x512xf32>,
    return
  }
}

</mosaic_0001>

<llo_original>
// kernel: tpu_custom_call.1
$region0: #{tpu_custom_call.1}
  #allocation0 [shape = 'u32[]', space=smem, size = 0x4, offset = 0x4, fixed_abs, tag = 'smem constant byte address 0x4 - core index']
  #allocation1 [shape = 'u32[72,128]{1,0:T(1,128)}', space=vmem, size = 0x9000, scoped, tag = 'internal scratch']
  %s0 = inlined_call_operand.hbm [shape: bf16[36,512], index: 0, kind: input, shape index: {}]
  %s1 = inlined_call_operand.vmem [shape: bf16[8,36], index: 1, kind: input, shape index: {}]
  %s2 = inlined_call_operand.vmem [shape: f32[8,1], index: 2, kind: input, shape index: {}]
  %s3 = inlined_call_operand.vmem [shape: f32[8,1], index: 3, kind: input, shape index: {}]
  %s4 = inlined_call_operand.hbm [shape: f32[8,512], index: 4, kind: output, shape index: {}]
  %s5 = sld [smem:[#allocation0]]
  $region30: #{tpu_custom_call.1} parent=0
    _
  %s7 = ssub.s32 1, %s5
  %s8 = scalar_select 0, %s7, %s5
  $region1: #{tpu_custom_call.1} parent=0
    #allocation2 [shape = 'u8[40960]{0}', space=vmem, size = 0xa000, scoped, tag = 'input window, operand 0, single buffered']
    #allocation3 [shape = 's32[1]{0}', space=sflag, size = 0x4, scoped, tag = 'scoped memory for tpu_custom_call.1']
    #allocation4 [shape = 's32[1]{0}', space=sflag, size = 0x4, scoped, tag = 'scoped memory for tpu_custom_call.1']
    #allocation5 [shape = 'u8[16384]{0}', space=vmem, size = 0x4000, scoped, tag = 'output window, operand 0, single buffered']
    %9 = vsyncpa [#allocation3], 0
    %10 = vsyncpa [#allocation4], 0
    // Predicated region
    $region2: #{tpu_custom_call.1} parent=1 // pred_check
      _
    $region3: #{tpu_custom_call.1} parent=1 // pred_check_branch
      %12 = sbr.rel (0) target = $region5
    $region4: #{tpu_custom_call.1} parent=1 // pred_region
      %14 = vsyncadd [#allocation3], 0
      %s15 = sshll.u32 %s0, 4
      %s16 = int_to_ptr.hbm [resolvable:$true] %s15
      %s17 = sshll.u32 [#allocation2], 4
      %s18 = int_to_ptr.vmem [resolvable:$true] %s17
      %23 = dma.hbm_to_vmem [thread:$0]  %s16, 1280, %s18, [#allocation3], 256, 256, 16
    $region5: #{tpu_custom_call.1} parent=1 // pred_fallthru
      _
    // Predicated region
    $region6: #{tpu_custom_call.1} parent=1 // pred_check
      _
    $region7: #{tpu_custom_call.1} parent=1 // pred_check_branch
      %25 = sbr.rel (0) target = $region9
    $region8: #{tpu_custom_call.1} parent=1 // pred_region
      _
    $region9: #{tpu_custom_call.1} parent=1 // pred_fallthru
      _
    // Predicated region
    $region10: #{tpu_custom_call.1} parent=1 // pred_check
      _
    $region11: #{tpu_custom_call.1} parent=1 // pred_check_branch
      %27 = sbr.rel (0) target = $region13
    $region12: #{tpu_custom_call.1} parent=1 // pred_region
      _
    $region13: #{tpu_custom_call.1} parent=1 // pred_fallthru
      _
    // Predicated region
    $region14: #{tpu_custom_call.1} parent=1 // pred_check
      _
    $region15: #{tpu_custom_call.1} parent=1 // pred_check_branch
      %29 = sbr.rel (0) target = $region17
    $region16: #{tpu_custom_call.1} parent=1 // pred_region
      _
    $region17: #{tpu_custom_call.1} parent=1 // pred_fallthru
      _
    // Predicated region
    $region18: #{tpu_custom_call.1} parent=1 // pred_check
      _
    $region19: #{tpu_custom_call.1} parent=1 // pred_check_branch
      %31 = sbr.rel (0) target = $region21
    $region20: #{tpu_custom_call.1} parent=1 // pred_region
      %33 = dma.done [#allocation3], 1280
    $region21: #{tpu_custom_call.1} parent=1 // pred_fallthru
      _
    %v35 = vld [vmem:[%s1] sm:$0xf]
    %v36 = vld [vmem:[#allocation2] sm:$0xff]
    %v37 = vld [vmem:[#allocation2 + $0x8] sm:$0xff]
    %v38 = vld [vmem:[#allocation2 + $0x10] sm:$0xff]
    %v39 = vld [vmem:[#allocation2 + $0x18] sm:$0xff]
    %v40 = vld [vmem:[#allocation2 + $0x20] sm:$0xff]
    %v41 = vld [vmem:[#allocation2 + $0x28] sm:$0xff]
    %v42 = vld [vmem:[#allocation2 + $0x30] sm:$0xff]
    %v43 = vld [vmem:[#allocation2 + $0x38] sm:$0xff]
    %v44 = vld [vmem:[#allocation2 + $0x40] sm:$0x33]
    %v45 = vld [vmem:[#allocation2 + $0x48] sm:$0x33]
    %v56 = vunpack.c.l.b16 %v36
    %v57 = vunpack.c.h.b16 %v36
    %v58 = vunpack.c.l.b16 %v37
    %v59 = vunpack.c.h.b16 %v37
    %v60 = vunpack.c.l.b16 %v38
    %v61 = vunpack.c.h.b16 %v38
    %v62 = vunpack.c.l.b16 %v39
    %v63 = vunpack.c.h.b16 %v39
    %v64 = vunpack.c.l.b16 %v40
    %v65 = vunpack.c.h.b16 %v40
    %v66 = vunpack.c.l.b16 %v41
    %v67 = vunpack.c.h.b16 %v41
    %v68 = vunpack.c.l.b16 %v42
    %v69 = vunpack.c.h.b16 %v42
    %v70 = vunpack.c.l.b16 %v43
    %v71 = vunpack.c.h.b16 %v43
    %v72 = vunpack.c.l.b16 %v44
    %v73 = vunpack.c.h.b16 %v44
    %v74 = vunpack.c.l.b16 %v45
    %v75 = vunpack.c.h.b16 %v45
    %v76 = vpack.c.b16 %v60, %v56
    %v77 = vpack.c.b16 %v61, %v57
    %v78 = vpack.c.b16 %v62, %v58
    %v79 = vpack.c.b16 %v63, %v59
    %v80 = vpack.c.b16 %v68, %v64
    %v81 = vpack.c.b16 %v69, %v65
    %v82 = vpack.c.b16 %v70, %v66
    %v83 = vpack.c.b16 %v71, %v67
    %v84 = vpack.c.b16 %v72, %v72
    %v85 = vpack.c.b16 %v73, %v73
    %v86 = vpack.c.b16 %v74, %v74
    %v87 = vpack.c.b16 %v75, %v75
    %vm96 = vcmask 293888
    %v98 = vsel %vm96, %v35, 0
    %vm100 = vcmask 1041408
    %v102 = vsel %vm100, %v84, 0
    %v105 = vsel %vm100, %v85, 0
    %v108 = vsel %vm100, %v86, 0
    %v111 = vsel %vm100, %v87, 0
    %113 = vmatpush.bf16.msra.mxu0 0
    %114 = vmatpush.bf16.msra.mxu0 0
    %115 = vmatpush.bf16.msra.mxu0 0
    %116 = vmatpush.bf16.msra.mxu0 0
    %117 = vmatpush.bf16.msra.mxu0 0
    %118 = vmatpush.bf16.msra.mxu0 %v102
    %119 = vmatpush.bf16.msra.mxu0 %v80
    %120 = vmatpush.bf16.msra.mxu0 %v76
    %121 = vmatmul.bf16.gmra.mxu0 %v98
    %v122 = vpop.f32.mrf.mxu0
    %v123 = vadd.f32 0.0, %v122
    %v124 = vpop.f32.mrf.mxu0
    %125 = vdwg.mxu0
    %126 = vmatpush.bf16.msra.mxu0 0
    %127 = vmatpush.bf16.msra.mxu0 0
    %128 = vmatpush.bf16.msra.mxu0 0
    %129 = vmatpush.bf16.msra.mxu0 0
    %130 = vmatpush.bf16.msra.mxu0 0
    %131 = vmatpush.bf16.msra.mxu0 %v105
    %132 = vmatpush.bf16.msra.mxu0 %v81
    %133 = vmatpush.bf16.msra.mxu0 %v77
    %134 = vmatmul.bf16.gmra.mxu0 %v98
    %v135 = vpop.f32.mrf.mxu0
    %v136 = vadd.f32 0.0, %v135
    %v137 = vpop.f32.mrf.mxu0
    %138 = vdwg.mxu0
    %139 = vmatpush.bf16.msra.mxu0 0
    %140 = vmatpush.bf16.msra.mxu0 0
    %141 = vmatpush.bf16.msra.mxu0 0
    %142 = vmatpush.bf16.msra.mxu0 0
    %143 = vmatpush.bf16.msra.mxu0 0
    %144 = vmatpush.bf16.msra.mxu0 %v108
    %145 = vmatpush.bf16.msra.mxu0 %v82
    %146 = vmatpush.bf16.msra.mxu0 %v78
    %147 = vmatmul.bf16.gmra.mxu0 %v98
    %v148 = vpop.f32.mrf.mxu0
    %v149 = vadd.f32 0.0, %v148
    %v150 = vpop.f32.mrf.mxu0
    %151 = vdwg.mxu0
    %152 = vmatpush.bf16.msra.mxu0 0
    %153 = vmatpush.bf16.msra.mxu0 0
    %154 = vmatpush.bf16.msra.mxu0 0
    %155 = vmatpush.bf16.msra.mxu0 0
    %156 = vmatpush.bf16.msra.mxu0 0
    %157 = vmatpush.bf16.msra.mxu0 %v111
    %158 = vmatpush.bf16.msra.mxu0 %v83
    %159 = vmatpush.bf16.msra.mxu0 %v79
    %160 = vmatmul.bf16.gmra.mxu0 %v98
    %v161 = vpop.f32.mrf.mxu0
    %v162 = vadd.f32 0.0, %v161
    %v163 = vpop.f32.mrf.mxu0
    %164 = vdwg.mxu0
    %v165 = vadd.f32 %v123, %v136
    %v166 = vadd.f32 %v165, %v149
    %v167 = vadd.f32 %v166, %v162
    %168 = vadd.xlane.f32.xlu0 %v167
    %v169 = vpop.xlane.xlu0 %168
    %v170 = vmul.f32 %v123, %v123
    %v171 = vmul.f32 %v136, %v136
    %v172 = vmul.f32 %v149, %v149
    %v173 = vmul.f32 %v162, %v162
    %v174 = vadd.f32 %v170, %v171
    %v175 = vadd.f32 %v174, %v172
    %v176 = vadd.f32 %v175, %v173
    %177 = vadd.xlane.f32.xlu0 %v176
    %v178 = vpop.xlane.xlu0 %177
    %v179 = vmul.f32 %v169, 0.001953125
    %v180 = vmul.f32 %v178, 0.001953125
    %v181 = vmul.f32 %v179, %v179
    %v182 = vsub.f32 %v180, %v181
    %v183 = vmax.f32 %v182, 0.0
    %v184 = vld [vmem:[%s2] sm:$0xff]
    %v185 = vadd.f32 %v183, 1e-05
    %v186 = vrsqrt.pop %v185
    %v187 = vmul.f32 %v186, %v185
    %v188 = vmul.f32 %v187, %v186
    %v189 = vmul.f32 0.5, %v188
    %v190 = vsub.f32 1.5, %v189
    %v191 = vmul.f32 %v186, %v190
    %vm192 = vweird.f32 %v185
    %vm193 = vweird.f32 %v186
    %vm194 = vmor %vm192, %vm193
    %v195 = vsel %vm194, %v186, %v191
    %v196 = vmul.f32 %v184, %v195
    %v197 = vld [vmem:[%s3] sm:$0xff]
    %v198 = vmul.f32 %v179, %v196
    %v199 = vsub.f32 %v197, %v198
    %201 = vset.pattern.permute.xlu0 0
    %202 = vperm.xlu0 %201, %v196
    %v203 = vpop.permute.xlu0 %202
    %v205 = vmul.f32 %v123, %v203
    %v206 = vmul.f32 %v136, %v203
    %v207 = vmul.f32 %v149, %v203
    %v208 = vmul.f32 %v162, %v203
    %210 = vset.pattern.permute.xlu0 0
    %211 = vperm.xlu0 %210, %v199
    %v212 = vpop.permute.xlu0 %211
    %v214 = vadd.f32 %v205, %v212
    %v215 = vadd.f32 %v206, %v212
    %v216 = vadd.f32 %v207, %v212
    %v217 = vadd.f32 %v208, %v212
    %v218 = vmax.f32 %v214, 0.0
    %v219 = vmax.f32 %v215, 0.0
    %v220 = vmax.f32 %v216, 0.0
    %v221 = vmax.f32 %v217, 0.0
    %222 = vst [vmem:[#allocation5] sm:$0xff] %v218
    %223 = vst [vmem:[#allocation5 + $0x8] sm:$0xff] %v219
    %224 = vst [vmem:[#allocation5 + $0x10] sm:$0xff] %v220
    %225 = vst [vmem:[#allocation5 + $0x18] sm:$0xff] %v221
    // Predicated region
    $region22: #{tpu_custom_call.1} parent=1 // pred_check
      _
    $region23: #{tpu_custom_call.1} parent=1 // pred_check_branch
      %227 = sbr.rel (0) target = $region25
    $region24: #{tpu_custom_call.1} parent=1 // pred_region
      %229 = vsyncadd [#allocation4], 0
      %s231 = sshll.u32 [#allocation5], 4
      %s232 = int_to_ptr.vmem [resolvable:$true] %s231
      %s233 = sshll.u32 %s4, 4
      %s234 = int_to_ptr.hbm [resolvable:$true] %s233
      %236 = dma.vmem_to_hbm [thread:$0]  %s232, 512, %s234, [#allocation4]
    $region25: #{tpu_custom_call.1} parent=1 // pred_fallthru
      _
    // Predicated region
    $region26: #{tpu_custom_call.1} parent=1 // pred_check
      _
    $region27: #{tpu_custom_call.1} parent=1 // pred_check_branch
      %238 = sbr.rel (0) target = $region29
    $region28: #{tpu_custom_call.1} parent=1 // pred_region
      %240 = dma.done [#allocation4], 512
    $region29: #{tpu_custom_call.1} parent=1 // pred_fallthru
      _
    %241 = vsyncpa [#allocation3], 1
    %242 = vsyncpa [#allocation4], 1

</llo_original>
